<compile_context>
chip_gen: v5e
topology: v5e:2x2
jax: 0.10.0
libtpu: 0.0.40
codegen_flags: <defaults>
</compile_context>

<pallas_src>
import functools

import jax
import jax.numpy as jnp
from jax.experimental import pallas as pl
from jax.experimental.pallas import tpu as pltpu

LANES = 128        # vreg lane width (last dim of every block)
SUBLANES = 8       # f32 sublane tile; bf16/int8 need 16/32 (see _min_sublanes)
CHUNK_ROWS = 512   # in-kernel sub-slice rows -> f32 temporaries stay ~0.25 MiB


def _cdiv(a, b):
    return -(-a // b)


def _min_sublanes(dtype):
    """Minimum second-minor tile rows for a dtype (8 for 4B, 16 for 2B, 32 for 1B)."""
    return {4: 8, 2: 16, 1: 32}.get(jnp.dtype(dtype).itemsize, 8)


def _num_parallel_cores():
    """Best-effort TensorCore count (2 on v7x, 1 on v5e/v6e), capped at 2.

    The leading "parallel" grid axis of this size shards rows across cores on
    multi-TC chips; on single-TC chips it is just a harmless serial split (it
    no longer introduces any padding), so we fall back to 2 when the hardware
    query is unavailable.
    """
    try:
        info = pltpu.get_tpu_info()
    except Exception:
        return 2
    for attr in ("num_cores", "num_tensorcores", "tensorcore_count", "cores_per_chip"):
        v = getattr(info, attr, None)
        if isinstance(v, int) and v >= 1:
            return max(1, min(int(v), 2))
    return 2


def _bce_sum_ref(x, y):
    """Plain-JAX BCE-with-logits sum (ragged tail / tiny-input fallback)."""
    x = x.astype(jnp.float32)
    y = y.astype(jnp.float32)
    return jnp.sum(jnp.maximum(x, 0.0) - x * y + jnp.log1p(jnp.exp(-jnp.abs(x))))


def _bce_partial_kernel(x_ref, y_ref, out_ref, *, full_chunks, chunk, rem):
    """Accumulates per-core partial BCE sums into a lane-dense (8, 128) slab.

    The (tm, 128) DMA block is processed in CHUNK_ROWS-row sub-slices so the
    f32 cast/BCE temporaries stay small even when the block is several MiB.
    The kernel only ever sees fully valid data, so there is no masking here.
    """
    @pl.when(pl.program_id(1) == 0)
    def _():
        out_ref[...] = jnp.zeros_like(out_ref)

    def accum(x, y):
        x = x.astype(jnp.float32)
        y = y.astype(jnp.float32)
        # Numerically-stable BCE with logits (PyTorch formulation):
        #   l = max(x, 0) - x*y + log1p(exp(-|x|))
        bce = jnp.maximum(x, 0.0) - x * y + jnp.log1p(jnp.exp(-jnp.abs(x)))
        r = bce.shape[0]
        # Fold onto the resident (8, 128) accumulator with pure VPU adds; the
        # single cross-lane reduce happens once, in the wrapper.
        out_ref[...] += jnp.sum(bce.reshape(r // SUBLANES, SUBLANES, LANES), axis=0)

    if full_chunks == 0:
        accum(x_ref[...], y_ref[...])          # whole (small) block at once
    else:
        if full_chunks == 1:
            accum(x_ref[pl.ds(0, chunk), :], y_ref[pl.ds(0, chunk), :])
        else:
            @pl.loop(0, full_chunks)
            def _(c):
                r0 = pl.multiple_of(c * chunk, chunk)
                accum(x_ref[pl.ds(r0, chunk), :], y_ref[pl.ds(r0, chunk), :])
        if rem:
            off = full_chunks * chunk          # static
            accum(x_ref[pl.ds(off, rem), :], y_ref[pl.ds(off, rem), :])


def focal_loss_binary(output, target, focusing_param=5.0, balance_param=0.9,
                      block_rows=8192):
    """Pallas equivalent of FocalLoss_binary.forward (reduction='mean').

    `output`/`target` may have any shape; they are flattened row-major exactly
    like PyTorch's BCEWithLogitsLoss mean reduction.  Inputs are NOT cast in
    the wrapper: feed bf16 logits and int8 (or bool->int8) targets directly to
    cut HBM traffic — the kernel casts to f32 internally.
    """
    assert output.shape == target.shape
    total = int(output.size)

    flat_x = output.reshape(-1)
    flat_y = target.reshape(-1)

    sub = max(_min_sublanes(output.dtype), _min_sublanes(target.dtype))
    rows = total // LANES                      # complete 128-lane rows
    ncores = _num_parallel_cores()

    # Rows each grid "core" is responsible for, floored to the layout multiple.
    per_core = (rows // ncores // sub) * sub
    if per_core == 0:
        ncores = 1
        per_core = (rows // sub) * sub

    if per_core == 0:
        # Fewer than one (sub, 128) tile of data: nothing for the kernel to do.
        bce_sum = _bce_sum_ref(flat_x, flat_y)
    else:
        block_rows = max(int(block_rows), CHUNK_ROWS)
        steps = _cdiv(per_core, block_rows)            # grid steps per core
        tm = (per_core // steps // sub) * sub          # rows per block (<= block_rows)
        full_chunks, rem = divmod(tm, CHUNK_ROWS)
        main_rows = ncores * steps * tm                # rows covered by the kernel
        main = main_rows * LANES

        # ---- layout plumbing: NO padding, NO dtype casts --------------------
        # When `total` is a multiple of 128 (the common case) the reshape below
        # is a pure bitcast -> zero extra HBM traffic before the kernel.  Only
        # for ragged totals do we pay one prefix-slice copy (XLA has no
        # sub-buffer views).
        if total % LANES == 0:
            x2d = flat_x.reshape(-1, LANES)
            y2d = flat_y.reshape(-1, LANES)
        else:
            x2d = flat_x[:main].reshape(main_rows, LANES)
            y2d = flat_y[:main].reshape(main_rows, LANES)

        kernel = functools.partial(
            _bce_partial_kernel,
            full_chunks=full_chunks, chunk=CHUNK_ROWS, rem=rem)

        # VMEM: 2 inputs x 2 pipeline buffers x (tm, 128) block, plus headroom
        # for the chunk-sized f32 temporaries and the tiny (8, 128) accumulator.
        in_block_bytes = tm * LANES * (x2d.dtype.itemsize + y2d.dtype.itemsize)
        vmem_limit = int(max(16 << 20, 2 * in_block_bytes + (6 << 20)))

        partials = pl.pallas_call(
            kernel,
            out_shape=jax.ShapeDtypeStruct((ncores * SUBLANES, LANES), jnp.float32),
            grid_spec=pltpu.PrefetchScalarGridSpec(
                num_scalar_prefetch=0,
                grid=(ncores, steps),
                in_specs=[
                    pl.BlockSpec((tm, LANES), lambda c, i: (c * steps + i, 0)),
                    pl.BlockSpec((tm, LANES), lambda c, i: (c * steps + i, 0)),
                ],
                out_specs=pl.BlockSpec((SUBLANES, LANES), lambda c, i: (c, 0)),
            ),
            compiler_params=pltpu.CompilerParams(
                dimension_semantics=("parallel", "arbitrary"),
                vmem_limit_bytes=vmem_limit),
        )(x2d, y2d)

        bce_sum = jnp.sum(partials)
        if main < total:
            # Ragged remainder (< one block-pair of rows plus a partial 128-lane
            # row): a tiny plain-JAX pass instead of padding the whole input.
            bce_sum = bce_sum + _bce_sum_ref(flat_x[main:], flat_y[main:])

    # Tiny finishing math (mean + scalar focal transform) in JAX.
    mean_bce = bce_sum / jnp.float32(total)
    logpt = -mean_bce
    pt = jnp.exp(logpt)
    focal = -((1.0 - pt) ** jnp.float32(focusing_param)) * logpt
    return jnp.float32(balance_param) * focal


def _reference_focal_loss(output, target, focusing_param=5.0, balance_param=0.9):
    x = output.astype(jnp.float32)
    y = target.astype(jnp.float32)
    bce = jnp.maximum(x, 0.0) - x * y + jnp.log1p(jnp.exp(-jnp.abs(x)))
    logpt = -jnp.mean(bce)
    pt = jnp.exp(logpt)
    focal = -((1.0 - pt) ** focusing_param) * logpt
    return balance_param * focal


if __name__ == "__main__":
    key = jax.random.PRNGKey(0)
    k1, k2, k3, k4, k5, k6 = jax.random.split(key, 6)

    # 1) Small NCHW-like logits and binary targets: (2, 4, 16, 16) -> 2048 elems
    #    (128-aligned -> fully zero-copy path through the kernel).
    logits = jax.random.normal(k1, (2, 4, 16, 16), dtype=jnp.float32)
    targets = (jax.random.uniform(k2, (2, 4, 16, 16)) > 0.5).astype(jnp.float32)
    loss = jax.block_until_ready(focal_loss_binary(logits, targets))
    ref = _reference_focal_loss(logits, targets)
    assert jnp.allclose(loss, ref, rtol=1e-5, atol=1e-6), (loss, ref)

    # 2) Ragged element count (1155, not a multiple of 128) exercises the
    #    plain-JAX tail path (no padding anywhere).
    logits_r = jax.random.normal(k3, (3, 5, 7, 11), dtype=jnp.float32)
    targets_r = (jax.random.uniform(k4, (3, 5, 7, 11)) > 0.5).astype(jnp.float32)
    loss_r = jax.block_until_ready(focal_loss_binary(logits_r, targets_r))
    ref_r = _reference_focal_loss(logits_r, targets_r)
    assert jnp.allclose(loss_r, ref_r, rtol=1e-5, atol=1e-6), (loss_r, ref_r)

    # 3) bf16 logits + larger slab exercises the in-kernel chunk loop and the
    #    dtype-dependent sublane rounding.
    logits_b = jax.random.normal(k5, (2, 8, 128, 128), dtype=jnp.bfloat16)
    targets_b = (jax.random.uniform(k6, (2, 8, 128, 128)) > 0.5).astype(jnp.float32)
    loss_b = jax.block_until_ready(focal_loss_binary(logits_b, targets_b))
    ref_b = _reference_focal_loss(logits_b, targets_b)
    assert jnp.allclose(loss_b, ref_b, rtol=1e-4, atol=1e-5), (loss_b, ref_b)

    print("KERNEL_OK")
</pallas_src>

<mosaic_0001>
module attributes {stable_mosaic.version = 11 : i64} {
  func.func @_bce_partial_kernel(%arg0: i32, %arg1: i32, %arg2: memref<8x128xf32, #tpu.memory_space<vmem>>, %arg3: memref<8x128xf32, #tpu.memory_space<vmem>>, %arg4: memref<8x128xf32, #tpu.memory_space<vmem>>) attributes {dimension_semantics = [#tpu.dimension_semantics<parallel>, #tpu.dimension_semantics<arbitrary>], iteration_bounds = array<i64: 2, 1>, scalar_prefetch = 0 : i64, scratch_operands = 0 : i64, tpu.core_type = #tpu.core_type<tc>, window_params = [{transform_indices = @transform_0, window_bounds = array<i64: 8, 128>}, {transform_indices = @transform_1, window_bounds = array<i64: 8, 128>}, {transform_indices = @transform_2, window_bounds = array<i64: 8, 128>}]} {
    %c0_i32 = arith.constant 0 : i32
    %0 = arith.cmpi eq, %arg1, %c0_i32 : i32
    %1 = arith.extui %0 : i1 to i32
    %c0_i32_0 = arith.constant 0 : i32
    %2 = arith.cmpi ne, %1, %c0_i32_0 : i32
    scf.if %2 {
      %cst_10 = arith.constant 0.000000e+00 : f32
      %20 = vector.broadcast %cst_10 : f32 to vector<8x128xf32>
      %c0_11 = arith.constant 0 : index
      %c0_12 = arith.constant 0 : index
      %21 = vector.load %arg4[%c0_11, %c0_12] : memref<8x128xf32, #tpu.memory_space<vmem>>, vector<8x128xf32>
      tpu.vector_store %arg4[%c0_11, %c0_12], %20 {strides = array<i32>} : memref<8x128xf32, #tpu.memory_space<vmem>>, vector<8x128xf32>,
    } else {
    }
    %c0 = arith.constant 0 : index
    %c0_1 = arith.constant 0 : index
    %3 = vector.load %arg2[%c0, %c0_1] : memref<8x128xf32, #tpu.memory_space<vmem>>, vector<8x128xf32>
    %c0_2 = arith.constant 0 : index
    %c0_3 = arith.constant 0 : index
    %4 = vector.load %arg3[%c0_2, %c0_3] : memref<8x128xf32, #tpu.memory_space<vmem>>, vector<8x128xf32>
    %cst = arith.constant 0.000000e+00 : f32
    %5 = vector.broadcast %cst : f32 to vector<8x128xf32>
    %6 = arith.maximumf %3, %5 : vector<8x128xf32>
    %7 = arith.mulf %3, %4 : vector<8x128xf32>
    %8 = arith.subf %6, %7 : vector<8x128xf32>
    %9 = math.absf %3 : vector<8x128xf32>
    %cst_4 = arith.constant 0.000000e+00 : f32
    %10 = vector.broadcast %cst_4 : f32 to vector<8x128xf32>
    %11 = arith.subf %10, %9 : vector<8x128xf32>
    %12 = math.exp %11 : vector<8x128xf32>
    %13 = math.log1p %12 : vector<8x128xf32>
    %14 = arith.addf %8, %13 : vector<8x128xf32>
    %c0_5 = arith.constant 0 : index
    %c0_6 = arith.constant 0 : index
    %15 = vector.load %arg4[%c0_5, %c0_6] : memref<8x128xf32, #tpu.memory_space<vmem>>, vector<8x128xf32>
    %16 = vector.shape_cast %14 : vector<8x128xf32> to vector<1x8x128xf32>
    %cst_7 = arith.constant dense<0.000000e+00> : vector<8x128xf32>
    %17 = vector.multi_reduction <add>, %16, %cst_7 [0] : vector<1x8x128xf32> to vector<8x128xf32>
    %18 = arith.addf %15, %17 : vector<8x128xf32>
    %c0_8 = arith.constant 0 : index
    %c0_9 = arith.constant 0 : index
    %19 = vector.load %arg4[%c0_8, %c0_9] : memref<8x128xf32, #tpu.memory_space<vmem>>, vector<8x128xf32>
    tpu.vector_store %arg4[%c0_8, %c0_9], %18 {strides = array<i32>} : memref<8x128xf32, #tpu.memory_space<vmem>>, vector<8x128xf32>,
    return
  }
  func.func @transform_0(%arg0: i32, %arg1: i32) -> (i32, i32) {
    %c1_i32 = arith.constant 1 : i32
    %0 = arith.muli %arg0, %c1_i32 : i32
    %1 = arith.addi %0, %arg1 : i32
    %c0_i32 = arith.constant 0 : i32
    %c0_i32_0 = arith.constant 0 : i32
    return %1, %c0_i32 : i32, i32
  }
  func.func @transform_1(%arg0: i32, %arg1: i32) -> (i32, i32) {
    %c1_i32 = arith.constant 1 : i32
    %0 = arith.muli %arg0, %c1_i32 : i32
    %1 = arith.addi %0, %arg1 : i32
    %c0_i32 = arith.constant 0 : i32
    %c0_i32_0 = arith.constant 0 : i32
    return %1, %c0_i32 : i32, i32
  }
  func.func @transform_2(%arg0: i32, %arg1: i32) -> (i32, i32) {
    %c0_i32 = arith.constant 0 : i32
    %c0_i32_0 = arith.constant 0 : i32
    return %arg0, %c0_i32 : i32, i32
  }
}

</mosaic_0001>

<llo_original>
// kernel: tpu_custom_call.1
$region0: #{tpu_custom_call.1}
  #allocation0 [shape = 'u32[]', space=smem, size = 0x4, offset = 0x4, fixed_abs, tag = 'smem constant byte address 0x4 - core index']
  #allocation1 [shape = 'u32[72,128]{1,0:T(1,128)}', space=vmem, size = 0x9000, scoped, tag = 'internal scratch']
  %s0 = inlined_call_operand.hbm [shape: f32[16,128], index: 0, kind: input, shape index: {}]
  %s1 = inlined_call_operand.hbm [shape: f32[16,128], index: 1, kind: input, shape index: {}]
  %s2 = inlined_call_operand.hbm [shape: f32[16,128], index: 2, kind: output, shape index: {}]
  %s3 = sld [smem:[#allocation0]]
  $region53: #{tpu_custom_call.1} parent=0
    _
  %s5 = ssub.s32 1, %s3
  %s6 = scalar_select 0, %s5, %s3
  $region1: #{tpu_custom_call.1} parent=0
    #allocation2 [shape = 'u8[8192]{0}', space=vmem, size = 0x2000, scoped, tag = 'input window, operand 0']
    #allocation3 [shape = 's32[2]{0}', space=sflag, size = 0x8, scoped, tag = 'scoped memory for tpu_custom_call.1']
    #allocation4 [shape = 's32[2]{0}', space=sflag, size = 0x8, scoped, tag = 'scoped memory for tpu_custom_call.1']
    #allocation5 [shape = 'u8[8192]{0}', space=vmem, size = 0x2000, scoped, tag = 'input window, operand 1']
    #allocation6 [shape = 's32[2]{0}', space=sflag, size = 0x8, scoped, tag = 'scoped memory for tpu_custom_call.1']
    #allocation7 [shape = 'u8[8192]{0}', space=vmem, size = 0x2000, scoped, tag = 'output window, operand 0']
    %7 = vsyncpa [#allocation3], 0
    %s8 = scalar_lea.sflag [#allocation3], 1
    %9 = vsyncpa %s8, 0
    %10 = vsyncpa [#allocation6], 0
    %s11 = scalar_lea.sflag [#allocation6], 1
    %12 = vsyncpa %s11, 0
    %13 = vsyncpa [#allocation4], 0
    %s14 = scalar_lea.sflag [#allocation4], 1
    %15 = vsyncpa %s14, 0
    loop: start=0, step=1, limit=4
    $region2: #{tpu_custom_call.1} parent=1 // loop_pre_header
      _
    $region3: #{tpu_custom_call.1} parent=1 // loop_header
      %s17 = sphi 0, %s21
      %p18 = scmp.ge.s32.totalorder %s17, 4
      %s24 = sphi 0, %s36
      %s25 = sphi 0, %s32
      %s26 = sphi 0, %s24
      %s27 = sphi 0, %s25
      %s28 = sphi 0, %s26
      %s29 = sphi 0, %s27
      %s41 = sphi 0, %s43
      %s44 = sphi 0, %s41
      %s45 = sphi 0, %s44
      %s61 = sphi 0, %s45
      %s69 = sphi 0, %s71
      %s72 = sphi 0, %s69
      %s73 = sphi 0, %s72
      %s89 = sphi 0, %s73
      %s95 = sphi 0, %s97
      %s98 = sphi 0, %s95
      %s99 = sphi 0, %s98
      %s115 = sphi 0, %s99
    $region4: #{tpu_custom_call.1} parent=1 // loop_header_branch
      %20 = sbr.rel (%p18) target = $region8
    $region5: #{tpu_custom_call.1} parent=1 // loop_body
      %s22 = ssub.s32 %s17, 1
      %s23 = ssub.s32 %s17, 2
      %s30 = sadd.s32 1, %s25
      %p31 = scmp.ge.s32.totalorder %s30, 1
      %s32 = scalar_select %p31, 0, %s30
      %s33 = sadd.s32 1, %s24
      %s34 = scalar_select %p31, %s33, %s24
      %p35 = scmp.ge.s32.totalorder %s34, 2
      %s36 = scalar_select %p35, 0, %s34
      %s37 = sadd.s32 %s24, %s25
      %s38 = sadd.s32 %s36, %s32
      %s39 = ssub.s32 %s37, %s38
      %p40 = scmp.eq.s32.totalorder %s39, 0
      %s42 = sadd.s32 %s41, 1
      %s43 = scalar_select %p40, %s41, %s42
      %p46 = pneg %p40
      %p47 = scmp.eq.s32.totalorder %s17, 1
      %p48 = por %p46, %p47
      %p49 = scmp.ne.s32.totalorder %s41, %s44
      %p50 = scmp.eq.s32.totalorder %s17, 0
      %p51 = por %p49, %p50
      %p52 = scmp.ne.s32.totalorder %s41, %s44
      %p53 = scmp.eq.s32.totalorder %s22, 1
      %p54 = por %p52, %p53
      %p55 = scmp.ne.s32.totalorder %s44, %s45
      %p56 = scmp.eq.s32.totalorder %s22, 0
      %p57 = por %p55, %p56
      %p58 = scmp.ne.s32.totalorder %s44, %s45
      %p59 = scmp.eq.s32.totalorder %s23, 1
      %p60 = por %p58, %p59
      %p62 = scmp.ne.s32.totalorder %s45, %s61
      %p63 = scmp.eq.s32.totalorder %s23, 0
      %p64 = por %p62, %p63
      %s65 = sadd.s32 %s24, %s25
      %s66 = sadd.s32 %s36, %s32
      %s67 = ssub.s32 %s65, %s66
      %p68 = scmp.eq.s32.totalorder %s67, 0
      %s70 = sadd.s32 %s69, 1
      %s71 = scalar_select %p68, %s69, %s70
      %p74 = pneg %p68
      %p75 = scmp.eq.s32.totalorder %s17, 1
      %p76 = por %p74, %p75
      %p77 = scmp.ne.s32.totalorder %s69, %s72
      %p78 = scmp.eq.s32.totalorder %s17, 0
      %p79 = por %p77, %p78
      %p80 = scmp.ne.s32.totalorder %s69, %s72
      %p81 = scmp.eq.s32.totalorder %s22, 1
      %p82 = por %p80, %p81
      %p83 = scmp.ne.s32.totalorder %s72, %s73
      %p84 = scmp.eq.s32.totalorder %s22, 0
      %p85 = por %p83, %p84
      %p86 = scmp.ne.s32.totalorder %s72, %s73
      %p87 = scmp.eq.s32.totalorder %s23, 1
      %p88 = por %p86, %p87
      %p90 = scmp.ne.s32.totalorder %s73, %s89
      %p91 = scmp.eq.s32.totalorder %s23, 0
      %p92 = por %p90, %p91
      %s93 = ssub.s32 %s24, %s36
      %p94 = scmp.eq.s32.totalorder %s93, 0
      %s96 = sadd.s32 %s95, 1
      %s97 = scalar_select %p94, %s95, %s96
      %p100 = pneg %p94
      %p101 = scmp.eq.s32.totalorder %s17, 1
      %p102 = por %p100, %p101
      %p103 = scmp.ne.s32.totalorder %s95, %s98
      %p104 = scmp.eq.s32.totalorder %s17, 0
      %p105 = por %p103, %p104
      %p106 = scmp.ne.s32.totalorder %s95, %s98
      %p107 = scmp.eq.s32.totalorder %s22, 1
      %p108 = por %p106, %p107
      %p109 = scmp.ne.s32.totalorder %s98, %s99
      %p110 = scmp.eq.s32.totalorder %s22, 0
      %p111 = por %p109, %p110
      %p112 = scmp.ne.s32.totalorder %s98, %s99
      %p113 = scmp.eq.s32.totalorder %s23, 1
      %p114 = por %p112, %p113
      %p116 = scmp.ne.s32.totalorder %s99, %s115
      %p117 = scmp.eq.s32.totalorder %s23, 0
      %p118 = por %p116, %p117
      %p119 = scmp.le.s32.totalorder 1, %s17
      %p120 = scmp.lt.s32.totalorder %s17, 3
      %p121 = pnand %p119, %p120
      %p122 = pneg %p121
      // Predicated region
      $region9: #{tpu_custom_call.1} parent=5 // pred_check
        _
      $region10: #{tpu_custom_call.1} parent=5 // pred_check_branch
        %124 = sbr.rel (%p121) target = $region12
      $region11: #{tpu_custom_call.1} parent=5 // pred_region
        %s125 = ssub.s32 %s17, 1
      $region12: #{tpu_custom_call.1} parent=5 // pred_fallthru
        _
      %p126 = scmp.lt.s32.totalorder %s17, 2
      // Predicated region
      $region13: #{tpu_custom_call.1} parent=5 // pred_check
        %p127 = pneg %p126
      $region14: #{tpu_custom_call.1} parent=5 // pred_check_branch
        %129 = sbr.rel (%p127) target = $region16
      $region15: #{tpu_custom_call.1} parent=5 // pred_region
        // Predicated region
        $region17: #{tpu_custom_call.1} parent=15 // pred_check
          %p130 = pneg %p51
        $region18: #{tpu_custom_call.1} parent=15 // pred_check_branch
          %132 = sbr.rel (%p130) target = $region20
        $region19: #{tpu_custom_call.1} parent=15 // pred_region
          %s133 = sand.u32 %s41, 1
          %s134 = scalar_lea.sflag [#allocation3], %s133
          %s135 = sand.u32 %s41, 1
          %s136 = smul.addr %s135, 8
          %s137 = scalar_lea.vmem [#allocation2], %s136
          %s138 = sadd.s32 %s24, %s25
          %140 = vsyncadd %s134, 0
          %s141 = smul.addr %s138, 8
          %s142 = scalar_lea.hbm %s0, %s141
          %s144 = sshll.u32 %s142, 4
          %s145 = int_to_ptr.hbm [resolvable:$true] %s144
          %s146 = sshll.u32 %s137, 4
          %s147 = int_to_ptr.vmem [resolvable:$true] %s146
          %149 = dma.hbm_to_vmem [thread:$0]  %s145, 128, %s147, %s134
        $region20: #{tpu_custom_call.1} parent=15 // pred_fallthru
          _
        // Predicated region
        $region21: #{tpu_custom_call.1} parent=15 // pred_check
          %p150 = pneg %p79
        $region22: #{tpu_custom_call.1} parent=15 // pred_check_branch
          %152 = sbr.rel (%p150) target = $region24
        $region23: #{tpu_custom_call.1} parent=15 // pred_region
          %s153 = sand.u32 %s69, 1
          %s154 = scalar_lea.sflag [#allocation6], %s153
          %s155 = sand.u32 %s69, 1
          %s156 = smul.addr %s155, 8
          %s157 = scalar_lea.vmem [#allocation5], %s156
          %s158 = sadd.s32 %s24, %s25
          %160 = vsyncadd %s154, 0
          %s161 = smul.addr %s158, 8
          %s162 = scalar_lea.hbm %s1, %s161
          %s164 = sshll.u32 %s162, 4
          %s165 = int_to_ptr.hbm [resolvable:$true] %s164
          %s166 = sshll.u32 %s157, 4
          %s167 = int_to_ptr.vmem [resolvable:$true] %s166
          %169 = dma.hbm_to_vmem [thread:$0]  %s165, 128, %s167, %s154
        $region24: #{tpu_custom_call.1} parent=15 // pred_fallthru
          _
      $region16: #{tpu_custom_call.1} parent=5 // pred_fallthru
        _
      %p170 = scmp.le.s32.totalorder 1, %s17
      %p171 = scmp.lt.s32.totalorder %s17, 3
      %p172 = pnand %p170, %p171
      %p173 = pneg %p172
      // Predicated region
      $region25: #{tpu_custom_call.1} parent=5 // pred_check
        _
      $region26: #{tpu_custom_call.1} parent=5 // pred_check_branch
        %175 = sbr.rel (%p172) target = $region28
      $region27: #{tpu_custom_call.1} parent=5 // pred_region
        %s176 = ssub.s32 %s17, 1
        %s177 = sand.u32 %s44, 1
        %s178 = scalar_lea.sflag [#allocation3], %s177
        %s179 = sand.u32 %s44, 1
        %s180 = smul.addr %s179, 8
        %s181 = scalar_lea.vmem [#allocation2], %s180
        // Predicated region
        $region29: #{tpu_custom_call.1} parent=27 // pred_check
          %p182 = pneg %p57
        $region30: #{tpu_custom_call.1} parent=27 // pred_check_branch
          %184 = sbr.rel (%p182) target = $region32
        $region31: #{tpu_custom_call.1} parent=27 // pred_region
          %186 = dma.done %s178, 128
        $region32: #{tpu_custom_call.1} parent=27 // pred_fallthru
          _
        %s187 = sand.u32 %s72, 1
        %s188 = scalar_lea.sflag [#allocation6], %s187
        %s189 = sand.u32 %s72, 1
        %s190 = smul.addr %s189, 8
        %s191 = scalar_lea.vmem [#allocation5], %s190
        // Predicated region
        $region33: #{tpu_custom_call.1} parent=27 // pred_check
          %p192 = pneg %p85
        $region34: #{tpu_custom_call.1} parent=27 // pred_check_branch
          %194 = sbr.rel (%p192) target = $region36
        $region35: #{tpu_custom_call.1} parent=27 // pred_region
          %196 = dma.done %s188, 128
        $region36: #{tpu_custom_call.1} parent=27 // pred_fallthru
          _
        %s197 = sand.u32 %s44, 1
        %s198 = scalar_lea.sflag [#allocation3], %s197
        %s199 = sand.u32 %s44, 1
        %s200 = smul.addr %s199, 8
        %s201 = scalar_lea.vmem [#allocation2], %s200
        %p202 = pneg %p57
        %p203 = pneg %p54
        %s204 = sand.u32 %s72, 1
        %s205 = scalar_lea.sflag [#allocation6], %s204
        %s206 = sand.u32 %s72, 1
        %s207 = smul.addr %s206, 8
        %s208 = scalar_lea.vmem [#allocation5], %s207
        %p209 = pneg %p85
        %p210 = pneg %p82
        %p211 = pneg %p111
        %p212 = pneg %p108
        %s213 = sand.u32 %s98, 1
        %s214 = scalar_lea.sflag [#allocation4], %s213
        %s215 = sand.u32 %s98, 1
        %s216 = smul.addr %s215, 8
        %s217 = scalar_lea.vmem [#allocation7], %s216
        %s218 = sadd.s32 %s26, %s27
        %s219 = sadd.s32 %s26, %s27
        %p220 = scmp.eq.s32.totalorder %s27, 0
        // Predicated region
        $region37: #{tpu_custom_call.1} parent=27 // pred_check
          %p221 = pneg %p220
        $region38: #{tpu_custom_call.1} parent=27 // pred_check_branch
          %223 = sbr.rel (%p221) target = $region40
        $region39: #{tpu_custom_call.1} parent=27 // pred_region
          %224 = vst [vmem:[%s217] sm:$0xff] 0.0
        $region40: #{tpu_custom_call.1} parent=27 // pred_fallthru
          _
        %v225 = vld [vmem:[%s181] sm:$0xff]
        %v226 = vld [vmem:[%s191] sm:$0xff]
        %v227 = vmax.f32 %v225, 0.0
        %v228 = vmul.f32 %v225, %v226
        %v229 = vsub.f32 %v227, %v228
        %v230 = vand.u32 2147483647, %v225
        %v231 = vsub.f32 0.0, %v230
        %v232 = vmul.f32 %v231, 1.442695
        %v233 = vpow.pop %v232
        %v234 = vadd.f32 %v233, 1.0
        %v235 = vlog2.pop %v234
        %v236 = vmul.f32 %v235, 0.6931472
        %v237 = vmul.f32 -0.5, %v233
        %v238 = vadd.f32 %v237, 1.0
        %v239 = vmul.f32 %v238, %v233
        %v240 = vand.u32 2147483647, %v233
        %vm241 = vcmp.lt.f32.partialorder %v240, 0.0004427343
        %v242 = vsel %vm241, %v239, %v236
        %v243 = vadd.f32 %v229, %v242
        %v244 = vld [vmem:[%s217] sm:$0xff]
        %v245 = vadd.f32 %v243, 0.0
        %v246 = vadd.f32 %v244, %v245
        %247 = vst [vmem:[%s217] sm:$0xff] %v246
        %s248 = sand.u32 %s98, 1
        %s249 = scalar_lea.sflag [#allocation4], %s248
        %s250 = sand.u32 %s98, 1
        %s251 = smul.addr %s250, 8
        %s252 = scalar_lea.vmem [#allocation7], %s251
        // Predicated region
        $region41: #{tpu_custom_call.1} parent=27 // pred_check
          %p253 = pneg %p108
        $region42: #{tpu_custom_call.1} parent=27 // pred_check_branch
          %255 = sbr.rel (%p253) target = $region44
        $region43: #{tpu_custom_call.1} parent=27 // pred_region
          %257 = vsyncadd %s249, 0
          %s258 = smul.addr %s26, 8
          %s259 = scalar_lea.hbm %s2, %s258
          %s261 = sshll.u32 %s252, 4
          %s262 = int_to_ptr.vmem [resolvable:$true] %s261
          %s263 = sshll.u32 %s259, 4
          %s264 = int_to_ptr.hbm [resolvable:$true] %s263
          %266 = dma.vmem_to_hbm [thread:$0]  %s262, 128, %s264, %s249
        $region44: #{tpu_custom_call.1} parent=27 // pred_fallthru
          _
      $region28: #{tpu_custom_call.1} parent=5 // pred_fallthru
        _
      %p267 = scmp.le.s32.totalorder 2, %s17
      // Predicated region
      $region45: #{tpu_custom_call.1} parent=5 // pred_check
        %p268 = pneg %p267
      $region46: #{tpu_custom_call.1} parent=5 // pred_check_branch
        %270 = sbr.rel (%p268) target = $region48
      $region47: #{tpu_custom_call.1} parent=5 // pred_region
        %s271 = ssub.s32 %s17, 2
        // Predicated region
        $region49: #{tpu_custom_call.1} parent=47 // pred_check
          %p272 = pneg %p114
        $region50: #{tpu_custom_call.1} parent=47 // pred_check_branch
          %274 = sbr.rel (%p272) target = $region52
        $region51: #{tpu_custom_call.1} parent=47 // pred_region
          %s275 = sand.u32 %s99, 1
          %s276 = scalar_lea.sflag [#allocation4], %s275
          %s277 = sand.u32 %s99, 1
          %s278 = smul.addr %s277, 8
          %s279 = scalar_lea.vmem [#allocation7], %s278
          %281 = dma.done %s276, 128
        $region52: #{tpu_custom_call.1} parent=47 // pred_fallthru
          _
      $region48: #{tpu_custom_call.1} parent=5 // pred_fallthru
        _
    $region6: #{tpu_custom_call.1} parent=1 // loop_footer
      %s21 = sadd.s32 1, %s17
    $region7: #{tpu_custom_call.1} parent=1 // loop_footer_branch
      %16 = sbr.rel target = $region3
    $region8: #{tpu_custom_call.1} parent=1 // loop_exit
      _
    %282 = vsyncpa [#allocation3], 1
    %s283 = scalar_lea.sflag [#allocation3], 1
    %284 = vsyncpa %s283, 1
    %285 = vsyncpa [#allocation6], 1
    %s286 = scalar_lea.sflag [#allocation6], 1
    %287 = vsyncpa %s286, 1
    %288 = vsyncpa [#allocation4], 1
    %s289 = scalar_lea.sflag [#allocation4], 1
    %290 = vsyncpa %s289, 1

</llo_original>
